<compile_context>
chip_gen: v5e
topology: v5e:2x2
jax: 0.10.0
libtpu: 0.0.40
codegen_flags: <defaults>
</compile_context>

<pallas_src>
import jax
import jax.numpy as jnp
from jax import lax
from jax.experimental import pallas as pl
from jax.experimental.pallas import tpu as pltpu

GENERAL_DEPTH = 24


def _action_value_kernel(w1t_ref, b1_ref, w2t_ref, b2_ref, x_ref, o_ref):
    # x_ref  : (TB, S) batch-major state tile, read straight from HBM
    #          (no wrapper transpose -> no extra HBM pass over the big tensor).
    # w1t_ref: (D, S), b1_ref: (D, 1), w2t_ref: (A, D), b2_ref: (A, 1).
    # Contract both operands on their shared last axis -> feature-major (D, TB)
    # hidden with batch on the lane axis (lane-dense compute & stores).
    h = lax.dot_general(
        w1t_ref[...], x_ref[...],
        dimension_numbers=(((1,), (1,)), ((), ())),
        preferred_element_type=jnp.float32)                  # (D, TB)
    h = jnp.maximum(h + b1_ref[...], 0.0)                    # bias bcast + ReLU
    y = jnp.dot(w2t_ref[...], h,
                preferred_element_type=jnp.float32)          # (A, TB)
    o_ref[...] = (y + b2_ref[...]).astype(o_ref.dtype)       # lane-dense store


def _pick_batch_tile(B, cap=32768):
    """Lane-aligned (multiple of 128) batch tile, as large as possible while
    guaranteeing >= 2 grid steps (so both v7x TensorCores get work)."""
    tb = ((B // 2) // 128) * 128          # round_down_to_128(B // 2)
    return max(128, min(cap, tb))


def action_value_forward(state, w1, b1, w2, b2):
    """state: (B, S) f32; w1: (S, D); b1: (D,); w2: (D, A); b2: (A,)."""
    B, S = state.shape
    D = w1.shape[1]
    A = w2.shape[1]

    # Layout plumbing only on the tiny parameters (weights / biases); the big
    # tensors (state in, Q out) are read/written lane-dense by the kernel.
    w1_t = w1.T                   # (D, S)
    w2_t = w2.T                   # (A, D)
    b1_c = b1.reshape(D, 1)
    b2_c = b2.reshape(A, 1)

    if B < 256:
        # Small batch: no grid at all — whole arrays as single VMEM blocks.
        out_t = pl.pallas_call(
            _action_value_kernel,
            out_shape=jax.ShapeDtypeStruct((A, B), state.dtype),
            in_specs=[pl.BlockSpec(memory_space=pltpu.MemorySpace.VMEM)] * 5,
            out_specs=pl.BlockSpec(memory_space=pltpu.MemorySpace.VMEM),
        )(w1_t, b1_c, w2_t, b2_c, state)
        return out_t.T

    # Large batch: tile the batch axis with a big lane-aligned tile.
    # Weights/biases keep block index (0, 0) every step -> VMEM-resident.
    TB = _pick_batch_tile(B)
    num_tiles = pl.cdiv(B, TB)    # ragged last block OK: batch lanes are
                                  # independent; OOB output lanes are dropped.
    out_t = pl.pallas_call(
        _action_value_kernel,
        out_shape=jax.ShapeDtypeStruct((A, B), state.dtype),
        grid=(num_tiles,),
        in_specs=[
            pl.BlockSpec((D, S), lambda i: (0, 0)),     # W1^T  (resident)
            pl.BlockSpec((D, 1), lambda i: (0, 0)),     # b1    (resident)
            pl.BlockSpec((A, D), lambda i: (0, 0)),     # W2^T  (resident)
            pl.BlockSpec((A, 1), lambda i: (0, 0)),     # b2    (resident)
            pl.BlockSpec((TB, S), lambda i: (i, 0)),    # state tile (no .T)
        ],
        out_specs=pl.BlockSpec((A, TB), lambda i: (0, i)),
        compiler_params=pltpu.CompilerParams(
            dimension_semantics=("parallel",),
            vmem_limit_bytes=32 * 1024 * 1024),         # headroom on v5e
    )(w1_t, b1_c, w2_t, b2_c, state)

    # Restore (B, A) for the caller (tiny tensor: 16 B/sample).
    # TODO(synk): if the consumer can accept (A, B) directly, skip this transpose.
    return out_t.T


def _ref_forward(state, w1, b1, w2, b2):
    h = jnp.maximum(state @ w1 + b1, 0.0)
    return h @ w2 + b2


if __name__ == "__main__":
    state_shape, action_shape = 16, 4

    key = jax.random.PRNGKey(0)
    k_x, k_w1, k_b1, k_w2, k_b2, k_x2, k_x3 = jax.random.split(key, 7)

    # Deterministic synthetic parameters (PyTorch nn.Linear-style uniform init).
    bound1 = 1.0 / (state_shape ** 0.5)
    bound2 = 1.0 / (GENERAL_DEPTH ** 0.5)
    w1 = jax.random.uniform(k_w1, (state_shape, GENERAL_DEPTH),
                            jnp.float32, -bound1, bound1)
    b1 = jax.random.uniform(k_b1, (GENERAL_DEPTH,), jnp.float32, -bound1, bound1)
    w2 = jax.random.uniform(k_w2, (GENERAL_DEPTH, action_shape),
                            jnp.float32, -bound2, bound2)
    b2 = jax.random.uniform(k_b2, (action_shape,), jnp.float32, -bound2, bound2)

    # 1) Small batch -> gridless single-block path.
    batch_small = 8
    state_small = jax.random.normal(k_x, (batch_small, state_shape), jnp.float32)
    out_small = jax.block_until_ready(
        action_value_forward(state_small, w1, b1, w2, b2))
    ref_small = _ref_forward(state_small, w1, b1, w2, b2)
    assert out_small.shape == (batch_small, action_shape)
    assert jnp.allclose(out_small, ref_small, atol=1e-5, rtol=1e-5), \
        "mismatch vs reference (small batch)"

    # 2) Batch divisible by 128 -> tiled parallel-grid path (TB=128, 3 steps).
    batch_tiled = 384
    state_tiled = jax.random.normal(k_x2, (batch_tiled, state_shape), jnp.float32)
    out_tiled = jax.block_until_ready(
        action_value_forward(state_tiled, w1, b1, w2, b2))
    ref_tiled = _ref_forward(state_tiled, w1, b1, w2, b2)
    assert out_tiled.shape == (batch_tiled, action_shape)
    assert jnp.allclose(out_tiled, ref_tiled, atol=1e-5, rtol=1e-5), \
        "mismatch vs reference (tiled batch)"

    # 3) Batch NOT divisible by 128 -> cdiv grid with a ragged last block.
    batch_ragged = 300
    state_ragged = jax.random.normal(k_x3, (batch_ragged, state_shape), jnp.float32)
    out_ragged = jax.block_until_ready(
        action_value_forward(state_ragged, w1, b1, w2, b2))
    ref_ragged = _ref_forward(state_ragged, w1, b1, w2, b2)
    assert out_ragged.shape == (batch_ragged, action_shape)
    assert jnp.allclose(out_ragged, ref_ragged, atol=1e-5, rtol=1e-5), \
        "mismatch vs reference (ragged batch)"

    print("KERNEL_OK")
</pallas_src>

<mosaic_0001>
module attributes {stable_mosaic.version = 11 : i64} {
  func.func @_action_value_kernel(%arg0: memref<24x16xf32, #tpu.memory_space<vmem>>, %arg1: memref<24x1xf32, #tpu.memory_space<vmem>>, %arg2: memref<4x24xf32, #tpu.memory_space<vmem>>, %arg3: memref<4x1xf32, #tpu.memory_space<vmem>>, %arg4: memref<8x16xf32, #tpu.memory_space<vmem>>, %arg5: memref<4x8xf32, #tpu.memory_space<vmem>>) attributes {dimension_semantics = [], scalar_prefetch = 0 : i64, scratch_operands = 0 : i64, tpu.core_type = #tpu.core_type<tc>} {
    %c0 = arith.constant 0 : index
    %c0_0 = arith.constant 0 : index
    %0 = vector.load %arg0[%c0, %c0_0] : memref<24x16xf32, #tpu.memory_space<vmem>>, vector<24x16xf32>
    %c0_1 = arith.constant 0 : index
    %c0_2 = arith.constant 0 : index
    %1 = vector.load %arg4[%c0_1, %c0_2] : memref<8x16xf32, #tpu.memory_space<vmem>>, vector<8x16xf32>
    %cst = arith.constant dense<0.000000e+00> : vector<24x8xf32>
    %2 = tpu.matmul %0, %1, %cst {dimension_numbers = #tpu.dot_dimension_numbers<[1], [1], [0], [0], [0, 0, 1, 0], [], []>} : vector<24x16xf32>, vector<8x16xf32>, vector<24x8xf32> -> vector<24x8xf32>
    %c0_3 = arith.constant 0 : index
    %c0_4 = arith.constant 0 : index
    %3 = vector.load %arg1[%c0_3, %c0_4] : memref<24x1xf32, #tpu.memory_space<vmem>>, vector<24x1xf32>
    %4 = vector.broadcast %3 : vector<24x1xf32> to vector<24x8xf32>
    %5 = arith.addf %2, %4 : vector<24x8xf32>
    %cst_5 = arith.constant 0.000000e+00 : f32
    %6 = vector.broadcast %cst_5 : f32 to vector<24x8xf32>
    %7 = arith.maximumf %5, %6 : vector<24x8xf32>
    %c0_6 = arith.constant 0 : index
    %c0_7 = arith.constant 0 : index
    %8 = vector.load %arg2[%c0_6, %c0_7] : memref<4x24xf32, #tpu.memory_space<vmem>>, vector<4x24xf32>
    %cst_8 = arith.constant dense<0.000000e+00> : vector<4x8xf32>
    %9 = tpu.matmul %8, %7, %cst_8 {dimension_numbers = #tpu.dot_dimension_numbers<[1], [0], [0], [1], [0, 0, 1, 1], [], []>} : vector<4x24xf32>, vector<24x8xf32>, vector<4x8xf32> -> vector<4x8xf32>
    %c0_9 = arith.constant 0 : index
    %c0_10 = arith.constant 0 : index
    %10 = vector.load %arg3[%c0_9, %c0_10] : memref<4x1xf32, #tpu.memory_space<vmem>>, vector<4x1xf32>
    %11 = vector.broadcast %10 : vector<4x1xf32> to vector<4x8xf32>
    %12 = arith.addf %9, %11 : vector<4x8xf32>
    %c0_11 = arith.constant 0 : index
    %c0_12 = arith.constant 0 : index
    %13 = vector.load %arg5[%c0_11, %c0_12] : memref<4x8xf32, #tpu.memory_space<vmem>>, vector<4x8xf32>
    tpu.vector_store %arg5[%c0_11, %c0_12], %12 {strides = array<i32>} : memref<4x8xf32, #tpu.memory_space<vmem>>, vector<4x8xf32>,
    return
  }
}

</mosaic_0001>

<llo_original>
// kernel: tpu_custom_call.1
$region0: #{tpu_custom_call.1}
  #allocation0 [shape = 'u32[]', space=smem, size = 0x4, offset = 0x4, fixed_abs, tag = 'smem constant byte address 0x4 - core index']
  #allocation1 [shape = 'u32[72,128]{1,0:T(1,128)}', space=vmem, size = 0x9000, scoped, tag = 'internal scratch']
  %s0 = inlined_call_operand.vmem [shape: f32[24,16], index: 0, kind: input, shape index: {}]
  %s1 = inlined_call_operand.vmem [shape: f32[24,1], index: 1, kind: input, shape index: {}]
  %s2 = inlined_call_operand.vmem [shape: f32[4,24], index: 2, kind: input, shape index: {}]
  %s3 = inlined_call_operand.vmem [shape: f32[4,1], index: 3, kind: input, shape index: {}]
  %s4 = inlined_call_operand.vmem [shape: f32[8,16], index: 4, kind: input, shape index: {}]
  %s5 = inlined_call_operand.hbm [shape: f32[4,8], index: 5, kind: output, shape index: {}]
  %s6 = sld [smem:[#allocation0]]
  $region30: #{tpu_custom_call.1} parent=0
    _
  %s8 = ssub.s32 1, %s6
  %s9 = scalar_select 0, %s8, %s6
  $region1: #{tpu_custom_call.1} parent=0
    #allocation2 [shape = 'u8[2048]{0}', space=vmem, size = 0x800, scoped, tag = 'output window, operand 0, single buffered']
    #allocation3 [shape = 's32[1]{0}', space=sflag, size = 0x4, scoped, tag = 'scoped memory for tpu_custom_call.1']
    %10 = vsyncpa [#allocation3], 0
    // Predicated region
    $region2: #{tpu_custom_call.1} parent=1 // pred_check
      _
    $region3: #{tpu_custom_call.1} parent=1 // pred_check_branch
      %12 = sbr.rel (0) target = $region5
    $region4: #{tpu_custom_call.1} parent=1 // pred_region
      _
    $region5: #{tpu_custom_call.1} parent=1 // pred_fallthru
      _
    // Predicated region
    $region6: #{tpu_custom_call.1} parent=1 // pred_check
      _
    $region7: #{tpu_custom_call.1} parent=1 // pred_check_branch
      %14 = sbr.rel (0) target = $region9
    $region8: #{tpu_custom_call.1} parent=1 // pred_region
      _
    $region9: #{tpu_custom_call.1} parent=1 // pred_fallthru
      _
    // Predicated region
    $region10: #{tpu_custom_call.1} parent=1 // pred_check
      _
    $region11: #{tpu_custom_call.1} parent=1 // pred_check_branch
      %16 = sbr.rel (0) target = $region13
    $region12: #{tpu_custom_call.1} parent=1 // pred_region
      _
    $region13: #{tpu_custom_call.1} parent=1 // pred_fallthru
      _
    // Predicated region
    $region14: #{tpu_custom_call.1} parent=1 // pred_check
      _
    $region15: #{tpu_custom_call.1} parent=1 // pred_check_branch
      %18 = sbr.rel (0) target = $region17
    $region16: #{tpu_custom_call.1} parent=1 // pred_region
      _
    $region17: #{tpu_custom_call.1} parent=1 // pred_fallthru
      _
    // Predicated region
    $region18: #{tpu_custom_call.1} parent=1 // pred_check
      _
    $region19: #{tpu_custom_call.1} parent=1 // pred_check_branch
      %20 = sbr.rel (0) target = $region21
    $region20: #{tpu_custom_call.1} parent=1 // pred_region
      _
    $region21: #{tpu_custom_call.1} parent=1 // pred_fallthru
      _
    %v21 = vld [vmem:[%s0] sm:$0xff]
    %v22 = vld [vmem:[%s0 + $0x8] sm:$0xff]
    %v23 = vld [vmem:[%s0 + $0x10] sm:$0xff]
    %v24 = vld [vmem:[%s4] sm:$0xff]
    %v25 = vld [vmem:[%s1] sm:$0xff]
    %v26 = vld [vmem:[%s1 + $0x8] sm:$0xff]
    %v27 = vld [vmem:[%s1 + $0x10] sm:$0xff]
    %29 = vset.pattern.permute.xlu0 0
    %30 = vperm.xlu0 %29, %v25
    %v31 = vpop.permute.xlu0 %30
    %34 = vset.pattern.permute.xlu0 0
    %35 = vperm.xlu0 %34, %v26
    %v36 = vpop.permute.xlu0 %35
    %39 = vset.pattern.permute.xlu0 0
    %40 = vperm.xlu0 %39, %v27
    %v41 = vpop.permute.xlu0 %40
    %vm43 = vcmask 130048
    %v45 = vsel %vm43, %v21, 0
    %v48 = vsel %vm43, %v22, 0
    %v51 = vsel %vm43, %v23, 0
    %v54 = vsel %vm43, %v24, 0
    %56 = vmatpush.xpose.msra.mxu0 0.0
    %57 = vmatpush.xpose.msra.mxu0 0.0
    %58 = vmatpush.xpose.msra.mxu0 0.0
    %59 = vmatpush.xpose.msra.mxu0 0.0
    %60 = vmatpush.xpose.msra.mxu0 0.0
    %61 = vmatpush.xpose.msra.mxu0 0.0
    %62 = vmatpush.xpose.msra.mxu0 0.0
    %63 = vmatpush.xpose.msra.mxu0 0.0
    %64 = vmatpush.xpose.msra.mxu0 0.0
    %65 = vmatpush.xpose.msra.mxu0 0.0
    %66 = vmatpush.xpose.msra.mxu0 0.0
    %67 = vmatpush.xpose.msra.mxu0 0.0
    %68 = vmatpush.xpose.msra.mxu0 0.0
    %69 = vmatpush.xpose.msra.mxu0 0.0
    %70 = vmatpush.xpose.msra.mxu0 0.0
    %71 = vmatpush.xpose.msra.mxu0 %v54
    %72 = vmatmul.f32.gmra.mxu0 %v45
    %v73 = vpop.f32.mrf.mxu0
    %v74 = vadd.f32 %v31, %v73
    %75 = vmatmul.f32.gmra.mxu0 %v48
    %v76 = vpop.f32.mrf.mxu0
    %v77 = vadd.f32 %v36, %v76
    %78 = vmatmul.f32.gmra.mxu0 %v51
    %v79 = vpop.f32.mrf.mxu0
    %v80 = vadd.f32 %v41, %v79
    %81 = vdwg.mxu0
    %v82 = vmax.f32 %v74, 0.0
    %v83 = vmax.f32 %v77, 0.0
    %v84 = vmax.f32 %v80, 0.0
    %v85 = vld [vmem:[%s2] sm:$0xf]
    %v86 = vld [vmem:[%s3] sm:$0xf]
    %88 = vset.pattern.permute.xlu0 0
    %89 = vperm.xlu0 %88, %v86
    %v90 = vpop.permute.xlu0 %89
    %vm92 = vcmask 195584
    %v94 = vsel %vm92, %v85, 0
    %96 = vmatpush.msra.mxu0 0.0
    %97 = vmatpush.msra.mxu0 0.0
    %98 = vmatpush.msra.mxu0 0.0
    %99 = vmatpush.msra.mxu0 0.0
    %100 = vmatpush.msra.mxu0 0.0
    %101 = vmatpush.msra.mxu0 0.0
    %102 = vmatpush.msra.mxu0 0.0
    %103 = vmatpush.msra.mxu0 0.0
    %104 = vmatpush.msra.mxu0 0.0
    %105 = vmatpush.msra.mxu0 0.0
    %106 = vmatpush.msra.mxu0 0.0
    %107 = vmatpush.msra.mxu0 0.0
    %108 = vmatpush.msra.mxu0 0.0
    %109 = vmatpush.msra.mxu0 %v84
    %110 = vmatpush.msra.mxu0 %v83
    %111 = vmatpush.msra.mxu0 %v82
    %112 = vmatmul.f32.gmra.mxu0 %v94
    %v113 = vpop.f32.mrf.mxu0
    %v114 = vadd.f32 %v90, %v113
    %115 = vdwg.mxu0
    %vm116 = vcmask 60416
    %117 = vst.msk [vmem:[#allocation2] sm:$0xf] %vm116, %v114
    // Predicated region
    $region22: #{tpu_custom_call.1} parent=1 // pred_check
      _
    $region23: #{tpu_custom_call.1} parent=1 // pred_check_branch
      %119 = sbr.rel (0) target = $region25
    $region24: #{tpu_custom_call.1} parent=1 // pred_region
      %121 = vsyncadd [#allocation3], 0
      %s123 = sshll.u32 [#allocation2], 4
      %s124 = int_to_ptr.vmem [resolvable:$true] %s123
      %s125 = sshll.u32 %s5, 4
      %s126 = int_to_ptr.hbm [resolvable:$true] %s125
      %128 = dma.vmem_to_hbm [thread:$0]  %s124, 64, %s126, [#allocation3]
    $region25: #{tpu_custom_call.1} parent=1 // pred_fallthru
      _
    // Predicated region
    $region26: #{tpu_custom_call.1} parent=1 // pred_check
      _
    $region27: #{tpu_custom_call.1} parent=1 // pred_check_branch
      %130 = sbr.rel (0) target = $region29
    $region28: #{tpu_custom_call.1} parent=1 // pred_region
      %132 = dma.done [#allocation3], 64
    $region29: #{tpu_custom_call.1} parent=1 // pred_fallthru
      _
    %133 = vsyncpa [#allocation3], 1

</llo_original>
